<compile_context>
chip_gen: v7x
topology: tpu7x:2x2x1
jax: 0.10.0
libtpu: 0.0.40
codegen_flags: <defaults>
</compile_context>

<pallas_src>
import functools

import jax
import jax.numpy as jnp
from jax.experimental import pallas as pl
from jax.experimental.pallas import tpu as pltpu


def _round_up(x, m):
    return ((x + m - 1) // m) * m


# ----------------------------------------------------------------------------
# Kernel
# ----------------------------------------------------------------------------
def _rnd_kernel(x_ref,
                wa_ref, ba_ref,      # fused [w1 | wt], [b1 | bt]
                w2_ref, b2_ref,
                w3_ref, b3_ref,
                pred_ref, targ_ref,
                *, h_pad):
    """One batch tile of the RND forward (predictor MLP + frozen target head)."""
    # Cast to the (bf16) weight dtype in-kernel: MXU runs single-pass at native bf16
    # rate while x stays f32 in HBM (no extra wrapper-side cast pass over x).
    x = x_ref[...].astype(wa_ref.dtype)

    # Fused first predictor layer + target head: one wide MXU pass over x.
    y = jnp.dot(x, wa_ref[...], preferred_element_type=jnp.float32) + ba_ref[...]
    targ_ref[...] = y[:, h_pad:].astype(targ_ref.dtype)        # target head output
    h1 = jnp.maximum(y[:, :h_pad], 0.0).astype(w2_ref.dtype)   # layer 1 + ReLU

    h2 = jnp.maximum(
        jnp.dot(h1, w2_ref[...], preferred_element_type=jnp.float32) + b2_ref[...],
        0.0).astype(w3_ref.dtype)
    pred = jnp.dot(h2, w3_ref[...], preferred_element_type=jnp.float32) + b3_ref[...]
    pred_ref[...] = pred.astype(pred_ref.dtype)


# ----------------------------------------------------------------------------
# Param preparation: lane-pad columns, fuse layer-1 with target head, cast bf16.
# ----------------------------------------------------------------------------
def prepare_rnd_params(params, *, weight_dtype=jnp.bfloat16):
    """(w1,b1,w2,b2,w3,b3,wt,bt) -> (wa, ba, w2p, b2p, w3p, b3p).

    Weight columns (and the hidden-contraction rows of w2/w3) are zero-padded to
    multiples of 128 so every matmul and output store is lane-dense.  The feature
    (F) rows of the fused first-layer weight stay unpadded, so x never needs to be
    padded/copied in HBM.  Weights are stored in `weight_dtype` (default bf16, MXU
    native); biases stay f32 (bias-add / ReLU run on the VPU in f32).
    """
    (w1, b1, w2, b2, w3, b3, wt, bt) = params
    F, H = w1.shape
    H2 = w2.shape[1]
    O = wt.shape[1]
    H_pad = _round_up(H, 128)
    H2_pad = _round_up(H2, 128)
    O_pad = _round_up(O, 128)

    def pad2(a, rows, cols):
        return jnp.pad(a, ((0, rows - a.shape[0]), (0, cols - a.shape[1])))

    # Column-wise fusion of predictor layer 1 and target head (same LHS x).
    wa = jnp.concatenate(
        [pad2(w1, F, H_pad), pad2(wt, F, O_pad)], axis=1).astype(weight_dtype)
    ba = jnp.concatenate(
        [pad2(b1, 1, H_pad), pad2(bt, 1, O_pad)], axis=1).astype(jnp.float32)
    w2p = pad2(w2, H_pad, H2_pad).astype(weight_dtype)
    b2p = pad2(b2, 1, H2_pad).astype(jnp.float32)
    w3p = pad2(w3, H2_pad, O_pad).astype(weight_dtype)
    b3p = pad2(b3, 1, O_pad).astype(jnp.float32)
    return (wa, ba, w2p, b2p, w3p, b3p)


# ----------------------------------------------------------------------------
# Forward wrapper
# ----------------------------------------------------------------------------
@functools.partial(jax.jit, static_argnames=("out_size",))
def rnd_forward(next_obs, prepared, *, out_size):
    """Batch-tiled RND forward.  Returns (predict_feature, target_feature)."""
    wa, ba, w2, b2, w3, b3 = prepared
    B, F = next_obs.shape
    assert wa.shape[0] == F, "prepared params do not match next_obs feature size"
    H_pad = w2.shape[0]
    H2_pad = w3.shape[0]
    O_pad = w3.shape[1]
    wide = H_pad + O_pad

    # ---- batch tile selection --------------------------------------------------
    TB_MAX = 512
    if B <= 8:
        TB = 8
    elif B <= 2 * TB_MAX:
        # >= 2 grid steps so "parallel" semantics can split tiles across v7x's two
        # TensorCores; per-step overhead (~0.35us) is negligible on v5e/v6e.
        TB = _round_up(pl.cdiv(B, 2), 8)
    else:
        TB = TB_MAX

    def _vmem_bytes(tb):
        # Double-buffered inputs/outputs + resident weights + in-kernel temporaries.
        weights = 2 * (wa.size * wa.dtype.itemsize + w2.size * w2.dtype.itemsize
                       + w3.size * w3.dtype.itemsize)
        biases = 2 * 4 * (wide + H2_pad + O_pad)
        x_tiles = 2 * tb * F * next_obs.dtype.itemsize
        out_tiles = 2 * 2 * tb * O_pad * 4
        interm = tb * (6 * wide + 6 * H2_pad + 4 * O_pad + 2 * F)
        return weights + biases + x_tiles + out_tiles + interm

    VMEM_BUDGET = 48 * 1024 * 1024        # keeps headroom on v7x's 64 MiB VMEM
    while TB > 8 and _vmem_bytes(TB) > VMEM_BUDGET:
        TB = max(8, _round_up(TB // 2, 8))
    # TODO(synk): for very large F (flattened image obs) add a K grid axis over F
    # with an f32 VMEM accumulator (P3 init/finalize) instead of shrinking TB.
    # TODO(synk): constant weight BlockSpecs could be single-buffered via
    # pipeline_mode=pl.Buffered(1) to halve weight VMEM; kept default for safety.

    vmem_limit = int(min(64 * 1024 * 1024,
                         max(32 * 1024 * 1024, 2 * _vmem_bytes(TB))))

    kernel = functools.partial(_rnd_kernel, h_pad=H_pad)

    pred, targ = pl.pallas_call(
        kernel,
        out_shape=(
            jax.ShapeDtypeStruct((B, O_pad), jnp.float32),
            jax.ShapeDtypeStruct((B, O_pad), jnp.float32),
        ),
        grid=(pl.cdiv(B, TB),),
        in_specs=[
            pl.BlockSpec((TB, F), lambda i: (i, 0)),        # x: batch-tiled, F full
            pl.BlockSpec((F, wide), lambda i: (0, 0)),      # fused W1|Wt (resident)
            pl.BlockSpec((1, wide), lambda i: (0, 0)),      # fused b1|bt
            pl.BlockSpec((H_pad, H2_pad), lambda i: (0, 0)),  # W2
            pl.BlockSpec((1, H2_pad), lambda i: (0, 0)),      # b2
            pl.BlockSpec((H2_pad, O_pad), lambda i: (0, 0)),  # W3
            pl.BlockSpec((1, O_pad), lambda i: (0, 0)),       # b3
        ],
        out_specs=(
            pl.BlockSpec((TB, O_pad), lambda i: (i, 0)),    # predictor out
            pl.BlockSpec((TB, O_pad), lambda i: (i, 0)),    # target out
        ),
        compiler_params=pltpu.CompilerParams(
            dimension_semantics=("parallel",),
            vmem_limit_bytes=vmem_limit),
    )(next_obs, wa, ba, w2, b2, w3, b3)

    return pred[:, :out_size], targ[:, :out_size]


# ----------------------------------------------------------------------------
# Init (matches nn.init.orthogonal_(gain=sqrt(2)), zero biases) + reference
# ----------------------------------------------------------------------------
def _orthogonal(key, shape, gain):
    # TODO(synk): exact nn.init.orthogonal_ semantics for non-square shapes would
    # QR the (rows, cols) matrix directly; the n x n truncation here is close enough
    # for a frozen random network (init-time only, does not affect kernel math).
    rows, cols = shape
    n = max(rows, cols)
    a = jax.random.normal(key, (n, n), dtype=jnp.float32)
    q, r = jnp.linalg.qr(a)
    d = jnp.diag(r)
    q = q * jnp.where(d >= 0, 1.0, -1.0)[None, :]
    return gain * q[:rows, :cols]


def init_rnd_params(key, input_size, output_size, hidden_dim=256):
    """Weights stored as (in, out); biases as (1, out), zero-initialized."""
    gain = jnp.sqrt(2.0)
    h2 = int(hidden_dim * 3 / 2)
    k1, k2, k3, kt = jax.random.split(key, 4)

    w1 = _orthogonal(k1, (input_size, hidden_dim), gain)
    b1 = jnp.zeros((1, hidden_dim), jnp.float32)
    w2 = _orthogonal(k2, (hidden_dim, h2), gain)
    b2 = jnp.zeros((1, h2), jnp.float32)
    w3 = _orthogonal(k3, (h2, output_size), gain)
    b3 = jnp.zeros((1, output_size), jnp.float32)
    wt = _orthogonal(kt, (input_size, output_size), gain)
    bt = jnp.zeros((1, output_size), jnp.float32)
    return (w1, b1, w2, b2, w3, b3, wt, bt)


def _reference(next_obs, params):
    (w1, b1, w2, b2, w3, b3, wt, bt) = params
    h1 = jnp.maximum(next_obs @ w1 + b1, 0.0)
    h2 = jnp.maximum(h1 @ w2 + b2, 0.0)
    pred = h2 @ w3 + b3
    targ = next_obs @ wt + bt
    return pred, targ


def _rel_err(a, b):
    return float(jnp.linalg.norm(a - b) / (jnp.linalg.norm(b) + 1e-12))


# ----------------------------------------------------------------------------
# Demo / correctness check
# ----------------------------------------------------------------------------
if __name__ == "__main__":
    TOL = 3e-2  # bf16 MXU operands; accumulation stays f32

    # --- small, module-consistent shapes: batch=8, F=32, hidden=32 (->48), O=16 ---
    batch, input_size, output_size, hidden_dim = 8, 32, 16, 32
    key = jax.random.PRNGKey(0)
    k_obs, k_params, k_obs2, k_params2 = jax.random.split(key, 4)

    next_obs = jax.random.normal(k_obs, (batch, input_size), dtype=jnp.float32)
    params = init_rnd_params(k_params, input_size, output_size, hidden_dim)
    prepared = prepare_rnd_params(params)

    pred, targ = rnd_forward(next_obs, prepared, out_size=output_size)
    jax.block_until_ready((pred, targ))

    ref_pred, ref_targ = _reference(next_obs, params)
    assert pred.shape == ref_pred.shape and targ.shape == ref_targ.shape
    assert _rel_err(pred, ref_pred) < TOL
    assert _rel_err(targ, ref_targ) < TOL

    # --- second check: partial last batch block (B=300, no padding copies) -------
    b2_, f2_, o2_, h2_ = 300, 64, 32, 64
    obs2 = jax.random.normal(k_obs2, (b2_, f2_), dtype=jnp.float32)
    params2 = init_rnd_params(k_params2, f2_, o2_, h2_)
    prepared2 = prepare_rnd_params(params2)

    pred2, targ2 = rnd_forward(obs2, prepared2, out_size=o2_)
    jax.block_until_ready((pred2, targ2))

    ref_pred2, ref_targ2 = _reference(obs2, params2)
    assert pred2.shape == ref_pred2.shape and targ2.shape == ref_targ2.shape
    assert _rel_err(pred2, ref_pred2) < TOL
    assert _rel_err(targ2, ref_targ2) < TOL

    print("KERNEL_OK")
</pallas_src>

<mosaic_0001>
module attributes {stable_mosaic.version = 11 : i64} {
  func.func @_rnd_kernel(%arg0: i32, %arg1: memref<8x32xf32, #tpu.memory_space<vmem>>, %arg2: memref<32x256xbf16, #tpu.memory_space<vmem>>, %arg3: memref<1x256xf32, #tpu.memory_space<vmem>>, %arg4: memref<128x128xbf16, #tpu.memory_space<vmem>>, %arg5: memref<1x128xf32, #tpu.memory_space<vmem>>, %arg6: memref<128x128xbf16, #tpu.memory_space<vmem>>, %arg7: memref<1x128xf32, #tpu.memory_space<vmem>>, %arg8: memref<8x128xf32, #tpu.memory_space<vmem>>, %arg9: memref<8x128xf32, #tpu.memory_space<vmem>>) attributes {dimension_semantics = [#tpu.dimension_semantics<parallel>], iteration_bounds = array<i64: 1>, scalar_prefetch = 0 : i64, scratch_operands = 0 : i64, tpu.core_type = #tpu.core_type<tc>, window_params = [{transform_indices = @transform_0, window_bounds = array<i64: 8, 32>}, {pipeline_mode = #tpu.pipeline_mode<synchronous>, transform_indices = @transform_1, window_bounds = array<i64: 32, 256>}, {pipeline_mode = #tpu.pipeline_mode<synchronous>, transform_indices = @transform_2, window_bounds = array<i64: 1, 256>}, {pipeline_mode = #tpu.pipeline_mode<synchronous>, transform_indices = @transform_3, window_bounds = array<i64: 128, 128>}, {pipeline_mode = #tpu.pipeline_mode<synchronous>, transform_indices = @transform_4, window_bounds = array<i64: 1, 128>}, {pipeline_mode = #tpu.pipeline_mode<synchronous>, transform_indices = @transform_5, window_bounds = array<i64: 128, 128>}, {pipeline_mode = #tpu.pipeline_mode<synchronous>, transform_indices = @transform_6, window_bounds = array<i64: 1, 128>}, {transform_indices = @transform_7, window_bounds = array<i64: 8, 128>}, {transform_indices = @transform_8, window_bounds = array<i64: 8, 128>}]} {
    %c0 = arith.constant 0 : index
    %c0_0 = arith.constant 0 : index
    %0 = vector.load %arg1[%c0, %c0_0] : memref<8x32xf32, #tpu.memory_space<vmem>>, vector<8x32xf32>
    %1 = arith.truncf %0 : vector<8x32xf32> to vector<8x32xbf16>
    %c0_1 = arith.constant 0 : index
    %c0_2 = arith.constant 0 : index
    %2 = vector.load %arg2[%c0_1, %c0_2] : memref<32x256xbf16, #tpu.memory_space<vmem>>, vector<32x256xbf16>
    %cst = arith.constant dense<0.000000e+00> : vector<8x256xf32>
    %3 = tpu.matmul %1, %2, %cst {dimension_numbers = #tpu.dot_dimension_numbers<[1], [0], [0], [1], [0, 0, 1, 1], [], []>} : vector<8x32xbf16>, vector<32x256xbf16>, vector<8x256xf32> -> vector<8x256xf32>
    %c0_3 = arith.constant 0 : index
    %c0_4 = arith.constant 0 : index
    %4 = vector.load %arg3[%c0_3, %c0_4] : memref<1x256xf32, #tpu.memory_space<vmem>>, vector<1x256xf32>
    %5 = vector.broadcast %4 : vector<1x256xf32> to vector<8x256xf32>
    %6 = arith.addf %3, %5 : vector<8x256xf32>
    %7 = vector.extract_strided_slice %6 {offsets = [0, 128], sizes = [8, 128], strides = [1, 1]} : vector<8x256xf32> to vector<8x128xf32>
    %c0_5 = arith.constant 0 : index
    %c0_6 = arith.constant 0 : index
    %8 = vector.load %arg9[%c0_5, %c0_6] : memref<8x128xf32, #tpu.memory_space<vmem>>, vector<8x128xf32>
    tpu.vector_store %arg9[%c0_5, %c0_6], %7 {strides = array<i32>} : memref<8x128xf32, #tpu.memory_space<vmem>>, vector<8x128xf32>,
    %9 = vector.extract_strided_slice %6 {offsets = [0, 0], sizes = [8, 128], strides = [1, 1]} : vector<8x256xf32> to vector<8x128xf32>
    %cst_7 = arith.constant 0.000000e+00 : f32
    %10 = vector.broadcast %cst_7 : f32 to vector<8x128xf32>
    %11 = arith.maximumf %9, %10 : vector<8x128xf32>
    %12 = arith.truncf %11 : vector<8x128xf32> to vector<8x128xbf16>
    %c0_8 = arith.constant 0 : index
    %c0_9 = arith.constant 0 : index
    %13 = vector.load %arg4[%c0_8, %c0_9] : memref<128x128xbf16, #tpu.memory_space<vmem>>, vector<128x128xbf16>
    %cst_10 = arith.constant dense<0.000000e+00> : vector<8x128xf32>
    %14 = tpu.matmul %12, %13, %cst_10 {dimension_numbers = #tpu.dot_dimension_numbers<[1], [0], [0], [1], [0, 0, 1, 1], [], []>} : vector<8x128xbf16>, vector<128x128xbf16>, vector<8x128xf32> -> vector<8x128xf32>
    %c0_11 = arith.constant 0 : index
    %c0_12 = arith.constant 0 : index
    %15 = vector.load %arg5[%c0_11, %c0_12] : memref<1x128xf32, #tpu.memory_space<vmem>>, vector<1x128xf32>
    %16 = vector.broadcast %15 : vector<1x128xf32> to vector<8x128xf32>
    %17 = arith.addf %14, %16 : vector<8x128xf32>
    %cst_13 = arith.constant 0.000000e+00 : f32
    %18 = vector.broadcast %cst_13 : f32 to vector<8x128xf32>
    %19 = arith.maximumf %17, %18 : vector<8x128xf32>
    %20 = arith.truncf %19 : vector<8x128xf32> to vector<8x128xbf16>
    %c0_14 = arith.constant 0 : index
    %c0_15 = arith.constant 0 : index
    %21 = vector.load %arg6[%c0_14, %c0_15] : memref<128x128xbf16, #tpu.memory_space<vmem>>, vector<128x128xbf16>
    %cst_16 = arith.constant dense<0.000000e+00> : vector<8x128xf32>
    %22 = tpu.matmul %20, %21, %cst_16 {dimension_numbers = #tpu.dot_dimension_numbers<[1], [0], [0], [1], [0, 0, 1, 1], [], []>} : vector<8x128xbf16>, vector<128x128xbf16>, vector<8x128xf32> -> vector<8x128xf32>
    %c0_17 = arith.constant 0 : index
    %c0_18 = arith.constant 0 : index
    %23 = vector.load %arg7[%c0_17, %c0_18] : memref<1x128xf32, #tpu.memory_space<vmem>>, vector<1x128xf32>
    %24 = vector.broadcast %23 : vector<1x128xf32> to vector<8x128xf32>
    %25 = arith.addf %22, %24 : vector<8x128xf32>
    %c0_19 = arith.constant 0 : index
    %c0_20 = arith.constant 0 : index
    %26 = vector.load %arg8[%c0_19, %c0_20] : memref<8x128xf32, #tpu.memory_space<vmem>>, vector<8x128xf32>
    tpu.vector_store %arg8[%c0_19, %c0_20], %25 {strides = array<i32>} : memref<8x128xf32, #tpu.memory_space<vmem>>, vector<8x128xf32>,
    return
  }
  func.func @transform_0(%arg0: i32) -> (i32, i32) {
    %c0_i32 = arith.constant 0 : i32
    %c0_i32_0 = arith.constant 0 : i32
    return %arg0, %c0_i32 : i32, i32
  }
  func.func @transform_1(%arg0: i32) -> (i32, i32) {
    %c0_i32 = arith.constant 0 : i32
    %c0_i32_0 = arith.constant 0 : i32
    %c0_i32_1 = arith.constant 0 : i32
    return %c0_i32, %c0_i32_0 : i32, i32
  }
  func.func @transform_2(%arg0: i32) -> (i32, i32) {
    %c0_i32 = arith.constant 0 : i32
    %c0_i32_0 = arith.constant 0 : i32
    %c0_i32_1 = arith.constant 0 : i32
    return %c0_i32, %c0_i32_0 : i32, i32
  }
  func.func @transform_3(%arg0: i32) -> (i32, i32) {
    %c0_i32 = arith.constant 0 : i32
    %c0_i32_0 = arith.constant 0 : i32
    %c0_i32_1 = arith.constant 0 : i32
    return %c0_i32, %c0_i32_0 : i32, i32
  }
  func.func @transform_4(%arg0: i32) -> (i32, i32) {
    %c0_i32 = arith.constant 0 : i32
    %c0_i32_0 = arith.constant 0 : i32
    %c0_i32_1 = arith.constant 0 : i32
    return %c0_i32, %c0_i32_0 : i32, i32
  }
  func.func @transform_5(%arg0: i32) -> (i32, i32) {
    %c0_i32 = arith.constant 0 : i32
    %c0_i32_0 = arith.constant 0 : i32
    %c0_i32_1 = arith.constant 0 : i32
    return %c0_i32, %c0_i32_0 : i32, i32
  }
  func.func @transform_6(%arg0: i32) -> (i32, i32) {
    %c0_i32 = arith.constant 0 : i32
    %c0_i32_0 = arith.constant 0 : i32
    %c0_i32_1 = arith.constant 0 : i32
    return %c0_i32, %c0_i32_0 : i32, i32
  }
  func.func @transform_7(%arg0: i32) -> (i32, i32) {
    %c0_i32 = arith.constant 0 : i32
    %c0_i32_0 = arith.constant 0 : i32
    return %arg0, %c0_i32 : i32, i32
  }
  func.func @transform_8(%arg0: i32) -> (i32, i32) {
    %c0_i32 = arith.constant 0 : i32
    %c0_i32_0 = arith.constant 0 : i32
    return %arg0, %c0_i32 : i32, i32
  }
}

</mosaic_0001>

<llo_original>
// kernel: rnd_forward.1
$region0: #{rnd_forward.1}
  #allocation0 [shape = 'u32[]', space=smem, size = 0x4, offset = 0x4, fixed_abs, tag = 'smem constant byte address 0x4 - core index']
  #allocation1 [shape = 'u32[144,128]{1,0:T(1,128)}', space=vmem, size = 0x12000, scoped, tag = 'internal scratch']
  %s0 = inlined_call_operand.hbm [shape: f32[8,32], index: 0, kind: input, shape index: {}]
  %s1 = inlined_call_operand.hbm [shape: bf16[32,256], index: 1, kind: input, shape index: {}]
  %s2 = inlined_call_operand.vmem [shape: f32[1,256], index: 2, kind: input, shape index: {}]
  %s3 = inlined_call_operand.hbm [shape: bf16[128,128], index: 3, kind: input, shape index: {}]
  %s4 = inlined_call_operand.vmem [shape: f32[1,128], index: 4, kind: input, shape index: {}]
  %s5 = inlined_call_operand.hbm [shape: bf16[128,128], index: 5, kind: input, shape index: {}]
  %s6 = inlined_call_operand.vmem [shape: f32[1,128], index: 6, kind: input, shape index: {}]
  %s7 = inlined_call_operand.hbm [shape: f32[8,128], index: 7, kind: output, shape index: {0}]
  %s8 = inlined_call_operand.hbm [shape: f32[8,128], index: 8, kind: output, shape index: {1}]
  %9 = xla_tuple %s7, %s8
  %s10 = sld [smem:[#allocation0]]
  $region62: #{rnd_forward.1} parent=0
    _
  %s12 = ssub.s32 1, %s10
  %s13 = scalar_select 0, %s12, %s10
  $region1: #{rnd_forward.1} parent=0
    #allocation2 [shape = 'u8[4096]{0}', space=vmem, size = 0x1000, scoped, tag = 'input window, operand 0, single buffered']
    #allocation3 [shape = 's32[1]{0}', space=sflag, size = 0x4, scoped, tag = 'scoped memory for rnd_forward.1']
    #allocation4 [shape = 's32[1]{0}', space=sflag, size = 0x4, scoped, tag = 'scoped memory for rnd_forward.1']
    #allocation5 [shape = 'u8[16384]{0}', space=vmem, size = 0x4000, scoped, tag = 'input window, operand 1, single buffered']
    #allocation6 [shape = 's32[1]{0}', space=sflag, size = 0x4, scoped, tag = 'scoped memory for rnd_forward.1']
    #allocation7 [shape = 'u8[32768]{0}', space=vmem, size = 0x8000, scoped, tag = 'input window, operand 3, single buffered']
    #allocation8 [shape = 'u8[32768]{0}', space=vmem, size = 0x8000, scoped, tag = 'input window, operand 5, single buffered']
    #allocation9 [shape = 's32[1]{0}', space=sflag, size = 0x4, scoped, tag = 'scoped memory for rnd_forward.1']
    #allocation10 [shape = 'u8[4096]{0}', space=vmem, size = 0x1000, scoped, tag = 'output window, operand 0, single buffered']
    #allocation11 [shape = 'u8[4096]{0}', space=vmem, size = 0x1000, scoped, tag = 'output window, operand 1, single buffered']
    #allocation12 [shape = 's32[1]{0}', space=sflag, size = 0x4, scoped, tag = 'scoped memory for rnd_forward.1']
    %14 = vsyncpa [#allocation3], 0
    %15 = vsyncpa [#allocation6], 0
    %16 = vsyncpa [#allocation9], 0
    %17 = vsyncpa [#allocation4], 0
    %18 = vsyncpa [#allocation12], 0
    // Predicated region
    $region2: #{rnd_forward.1} parent=1 // pred_check
      _
    $region3: #{rnd_forward.1} parent=1 // pred_check_branch
      %20 = sbr.rel (0) target = $region5
    $region4: #{rnd_forward.1} parent=1 // pred_region
      %s22 = ssub.s32 128, 128
      %23 = vsyncadd [#allocation3], %s22
      %s25 = sshll.u32 [#allocation2], 4
      %s26 = int_to_ptr.vmem [resolvable:$true] %s25
      %28 = dma.hbm_to_vmem [thread:$0]  %s0, 128, %s26, [#allocation3]
    $region5: #{rnd_forward.1} parent=1 // pred_fallthru
      _
    // Predicated region
    $region6: #{rnd_forward.1} parent=1 // pred_check
      _
    $region7: #{rnd_forward.1} parent=1 // pred_check_branch
      %30 = sbr.rel (0) target = $region9
    $region8: #{rnd_forward.1} parent=1 // pred_region
      %s32 = ssub.s32 512, 512
      %33 = vsyncadd [#allocation6], %s32
      %s34 = sshll.u32 [#allocation5], 4
      %s35 = int_to_ptr.vmem [resolvable:$true] %s34
      %40 = dma.hbm_to_vmem [thread:$0]  %s1, 512, %s35, [#allocation6], 128, 128, 8
    $region9: #{rnd_forward.1} parent=1 // pred_fallthru
      _
    // Predicated region
    $region10: #{rnd_forward.1} parent=1 // pred_check
      _
    $region11: #{rnd_forward.1} parent=1 // pred_check_branch
      %42 = sbr.rel (0) target = $region13
    $region12: #{rnd_forward.1} parent=1 // pred_region
      _
    $region13: #{rnd_forward.1} parent=1 // pred_fallthru
      _
    // Predicated region
    $region14: #{rnd_forward.1} parent=1 // pred_check
      _
    $region15: #{rnd_forward.1} parent=1 // pred_check_branch
      %44 = sbr.rel (0) target = $region17
    $region16: #{rnd_forward.1} parent=1 // pred_region
      %s46 = ssub.s32 1024, 1024
      %47 = vsyncadd [#allocation6], %s46
      %s48 = sshll.u32 [#allocation7], 4
      %s49 = int_to_ptr.vmem [resolvable:$true] %s48
      %54 = dma.hbm_to_vmem [thread:$0]  %s3, 1024, %s49, [#allocation6], 64, 64, 4
    $region17: #{rnd_forward.1} parent=1 // pred_fallthru
      _
    // Predicated region
    $region18: #{rnd_forward.1} parent=1 // pred_check
      _
    $region19: #{rnd_forward.1} parent=1 // pred_check_branch
      %56 = sbr.rel (0) target = $region21
    $region20: #{rnd_forward.1} parent=1 // pred_region
      _
    $region21: #{rnd_forward.1} parent=1 // pred_fallthru
      _
    // Predicated region
    $region22: #{rnd_forward.1} parent=1 // pred_check
      _
    $region23: #{rnd_forward.1} parent=1 // pred_check_branch
      %58 = sbr.rel (0) target = $region25
    $region24: #{rnd_forward.1} parent=1 // pred_region
      %s60 = ssub.s32 1024, 1024
      %61 = vsyncadd [#allocation9], %s60
      %s62 = sshll.u32 [#allocation8], 4
      %s63 = int_to_ptr.vmem [resolvable:$true] %s62
      %68 = dma.hbm_to_vmem [thread:$0]  %s5, 1024, %s63, [#allocation9], 64, 64, 4
    $region25: #{rnd_forward.1} parent=1 // pred_fallthru
      _
    // Predicated region
    $region26: #{rnd_forward.1} parent=1 // pred_check
      _
    $region27: #{rnd_forward.1} parent=1 // pred_check_branch
      %70 = sbr.rel (0) target = $region29
    $region28: #{rnd_forward.1} parent=1 // pred_region
      _
    $region29: #{rnd_forward.1} parent=1 // pred_fallthru
      _
    // Predicated region
    $region30: #{rnd_forward.1} parent=1 // pred_check
      _
    $region31: #{rnd_forward.1} parent=1 // pred_check_branch
      %72 = sbr.rel (0) target = $region33
    $region32: #{rnd_forward.1} parent=1 // pred_region
      %73 = dma.done [#allocation3], 128
    $region33: #{rnd_forward.1} parent=1 // pred_fallthru
      _
    // Predicated region
    $region34: #{rnd_forward.1} parent=1 // pred_check
      _
    $region35: #{rnd_forward.1} parent=1 // pred_check_branch
      %75 = sbr.rel (0) target = $region37
    $region36: #{rnd_forward.1} parent=1 // pred_region
      %76 = dma.done [#allocation6], 512
    $region37: #{rnd_forward.1} parent=1 // pred_fallthru
      _
    // Predicated region
    $region38: #{rnd_forward.1} parent=1 // pred_check
      _
    $region39: #{rnd_forward.1} parent=1 // pred_check_branch
      %78 = sbr.rel (0) target = $region41
    $region40: #{rnd_forward.1} parent=1 // pred_region
      %79 = dma.done [#allocation6], 1024
    $region41: #{rnd_forward.1} parent=1 // pred_fallthru
      _
    // Predicated region
    $region42: #{rnd_forward.1} parent=1 // pred_check
      _
    $region43: #{rnd_forward.1} parent=1 // pred_check_branch
      %81 = sbr.rel (0) target = $region45
    $region44: #{rnd_forward.1} parent=1 // pred_region
      %82 = dma.done [#allocation9], 1024
    $region45: #{rnd_forward.1} parent=1 // pred_fallthru
      _
    %v84 = vld [vmem:[#allocation2] sm:$0xff]
    %v85 = vpack.c.bf16 %v84, %v84
    %v86 = vld [vmem:[#allocation5] sm:$0xff]
    %v87 = vld [vmem:[#allocation5 + $0x8] sm:$0xff]
    %v88 = vld [vmem:[#allocation5 + $0x10] sm:$0xff]
    %v89 = vld [vmem:[#allocation5 + $0x18] sm:$0xff]
    %v90 = vld [vmem:[%s2] sm:$0x3]
    %v92 = vlaneseq
    %v93 = vshrl.u32 %v92, 7
    %v94 = vsub.s32 0, %v93
    %v95 = vrot.slane %v90, %v94
    %v96 = vlaneseq
    %v97 = vshrl.u32 %v96, 7
    %v98 = vsub.s32 1, %v97
    %v99 = vrot.slane %v90, %v98
    %v106 = vunpack.c.l.b16 %v86
    %v107 = vunpack.c.h.b16 %v86
    %v108 = vunpack.c.l.b16 %v87
    %v109 = vunpack.c.h.b16 %v87
    %v110 = vunpack.c.l.b16 %v88
    %v111 = vunpack.c.h.b16 %v88
    %v112 = vunpack.c.l.b16 %v89
    %v113 = vunpack.c.h.b16 %v89
    %v114 = vpack.c.b16 %v108, %v106
    %v115 = vpack.c.b16 %v109, %v107
    %v116 = vpack.c.b16 %v112, %v110
    %v117 = vpack.c.b16 %v113, %v111
    %vm122 = vcmask 261120
    %v124 = vsel %vm122, %v85, 0
    %126 = vmatprep.subr.bf16.mxu0 %v115
    %127 = vmatpush1.bf16.msra.mxu0 %v114
    %128 = vmatprep.subr.bf16.mxu0 %v117
    %129 = vmatpush1.bf16.msra.mxu0 %v116
    %130 = vmatprep.subr.bf16.mxu0 0
    %131 = vmatpush1.bf16.msra.mxu0 0
    %132 = vmatprep.subr.bf16.mxu0 0
    %133 = vmatpush1.bf16.msra.mxu0 0
    %134 = vmatprep.subr.bf16.mxu0 0
    %135 = vmatpush1.bf16.msra.mxu0 0
    %136 = vmatprep.subr.bf16.mxu0 0
    %137 = vmatpush1.bf16.msra.mxu0 0
    %138 = vmatprep.subr.bf16.mxu0 0
    %139 = vmatpush1.bf16.msra.mxu0 0
    %140 = vmatprep.subr.bf16.mxu0 0
    %141 = vmatpush1.bf16.msra.mxu0 0
    %142 = vmatprep.subr.bf16.mxu0 0
    %143 = vmatpush1.bf16.msra.mxu0 0
    %144 = vmatprep.subr.bf16.mxu0 0
    %145 = vmatpush1.bf16.msra.mxu0 0
    %146 = vmatprep.subr.bf16.mxu0 0
    %147 = vmatpush1.bf16.msra.mxu0 0
    %148 = vmatprep.subr.bf16.mxu0 0
    %149 = vmatpush1.bf16.msra.mxu0 0
    %150 = vmatprep.subr.bf16.mxu0 0
    %151 = vmatpush1.bf16.msra.mxu0 0
    %152 = vmatprep.subr.bf16.mxu0 0
    %153 = vmatpush1.bf16.msra.mxu0 0
    %154 = vmatprep.subr.bf16.mxu0 0
    %155 = vmatpush1.bf16.msra.mxu0 0
    %156 = vmatprep.subr.bf16.mxu0 0
    %157 = vmatpush1.bf16.msra.mxu0 0
    %158 = vmatprep.mubr.bf16.mxu0 0
    %159 = vmatmul.mubr.bf16.gmra.mrb[0].mxu0 %v124
    %v160 = vpop.f32.mrb[0].mxu0
    %v161 = vadd.f32 %v95, %v160
    %v162 = vpop.f32.mrb[0].mxu0
    %v163 = vadd.f32 %v99, %v162
    %v164 = vpop.f32.mrb[0].mxu0
    %v165 = vpop.f32.mrb[0].mxu0
    %166 = vdwg.mxu0
    %167 = vst [vmem:[#allocation11] sm:$0xff] %v163
    %v168 = vmax.f32 %v161, 0.0
    %v169 = vpack.c.bf16 %v168, %v168
    %v170 = vld [vmem:[#allocation7] sm:$0xf]
    %v171 = vld [vmem:[#allocation7 + $0x4] sm:$0xf]
    %v172 = vld [vmem:[#allocation7 + $0x8] sm:$0xf]
    %v173 = vld [vmem:[#allocation7 + $0xc] sm:$0xf]
    %v174 = vld [vmem:[#allocation7 + $0x10] sm:$0xf]
    %v175 = vld [vmem:[#allocation7 + $0x14] sm:$0xf]
    %v176 = vld [vmem:[#allocation7 + $0x18] sm:$0xf]
    %v177 = vld [vmem:[#allocation7 + $0x1c] sm:$0xf]
    %v178 = vld [vmem:[#allocation7 + $0x20] sm:$0xf]
    %v179 = vld [vmem:[#allocation7 + $0x24] sm:$0xf]
    %v180 = vld [vmem:[#allocation7 + $0x28] sm:$0xf]
    %v181 = vld [vmem:[#allocation7 + $0x2c] sm:$0xf]
    %v182 = vld [vmem:[#allocation7 + $0x30] sm:$0xf]
    %v183 = vld [vmem:[#allocation7 + $0x34] sm:$0xf]
    %v184 = vld [vmem:[#allocation7 + $0x38] sm:$0xf]
    %v185 = vld [vmem:[#allocation7 + $0x3c] sm:$0xf]
    %v186 = vld [vmem:[%s4] sm:$0x1]
    %v188 = vlaneseq
    %v189 = vshrl.u32 %v188, 7
    %v190 = vsub.s32 0, %v189
    %v191 = vrot.slane %v186, %v190
    %v209 = vunpack.c.l.b16 %v170
    %v210 = vunpack.c.l.b16 %v171
    %v211 = vunpack.c.l.b16 %v172
    %v212 = vunpack.c.l.b16 %v173
    %v213 = vunpack.c.l.b16 %v174
    %v214 = vunpack.c.l.b16 %v175
    %v215 = vunpack.c.l.b16 %v176
    %v216 = vunpack.c.l.b16 %v177
    %v217 = vunpack.c.l.b16 %v178
    %v218 = vunpack.c.l.b16 %v179
    %v219 = vunpack.c.l.b16 %v180
    %v220 = vunpack.c.l.b16 %v181
    %v221 = vunpack.c.l.b16 %v182
    %v222 = vunpack.c.l.b16 %v183
    %v223 = vunpack.c.l.b16 %v184
    %v224 = vunpack.c.l.b16 %v185
    %v225 = vpack.c.b16 %v210, %v209
    %v226 = vpack.c.b16 %v212, %v211
    %v227 = vpack.c.b16 %v214, %v213
    %v228 = vpack.c.b16 %v216, %v215
    %v229 = vpack.c.b16 %v218, %v217
    %v230 = vpack.c.b16 %v220, %v219
    %v231 = vpack.c.b16 %v222, %v221
    %v232 = vpack.c.b16 %v224, %v223
    %241 = vmatprep.subr.bf16.mxu0 0
    %242 = vmatpush1.bf16.msra.mxu0 %v225
    %243 = vmatprep.subr.bf16.mxu0 0
    %244 = vmatpush1.bf16.msra.mxu0 %v226
    %245 = vmatprep.subr.bf16.mxu0 0
    %246 = vmatpush1.bf16.msra.mxu0 %v227
    %247 = vmatprep.subr.bf16.mxu0 0
    %248 = vmatpush1.bf16.msra.mxu0 %v228
    %249 = vmatprep.subr.bf16.mxu0 0
    %250 = vmatpush1.bf16.msra.mxu0 %v229
    %251 = vmatprep.subr.bf16.mxu0 0
    %252 = vmatpush1.bf16.msra.mxu0 %v230
    %253 = vmatprep.subr.bf16.mxu0 0
    %254 = vmatpush1.bf16.msra.mxu0 %v231
    %255 = vmatprep.subr.bf16.mxu0 0
    %256 = vmatpush1.bf16.msra.mxu0 %v232
    %257 = vmatprep.subr.bf16.mxu0 0
    %258 = vmatpush1.bf16.msra.mxu0 0
    %259 = vmatprep.subr.bf16.mxu0 0
    %260 = vmatpush1.bf16.msra.mxu0 0
    %261 = vmatprep.subr.bf16.mxu0 0
    %262 = vmatpush1.bf16.msra.mxu0 0
    %263 = vmatprep.subr.bf16.mxu0 0
    %264 = vmatpush1.bf16.msra.mxu0 0
    %265 = vmatprep.subr.bf16.mxu0 0
    %266 = vmatpush1.bf16.msra.mxu0 0
    %267 = vmatprep.subr.bf16.mxu0 0
    %268 = vmatpush1.bf16.msra.mxu0 0
    %269 = vmatprep.subr.bf16.mxu0 0
    %270 = vmatpush1.bf16.msra.mxu0 0
    %271 = vmatprep.subr.bf16.mxu0 0
    %272 = vmatpush1.bf16.msra.mxu0 0
    %273 = vmatprep.mubr.bf16.mxu0 0
    %274 = vmatmul.mubr.bf16.gmra.mrb[0].mxu0 %v169
    %v275 = vpop.f32.mrb[0].mxu0
    %v276 = vadd.f32 %v191, %v275
    %v277 = vpop.f32.mrb[0].mxu0
    %v278 = vpop.f32.mrb[0].mxu0
    %v279 = vpop.f32.mrb[0].mxu0
    %280 = vdwg.mxu0
    %v281 = vmax.f32 %v276, 0.0
    %v282 = vpack.c.bf16 %v281, %v281
    %v283 = vld [vmem:[#allocation8] sm:$0xf]
    %v284 = vld [vmem:[#allocation8 + $0x4] sm:$0xf]
    %v285 = vld [vmem:[#allocation8 + $0x8] sm:$0xf]
    %v286 = vld [vmem:[#allocation8 + $0xc] sm:$0xf]
    %v287 = vld [vmem:[#allocation8 + $0x10] sm:$0xf]
    %v288 = vld [vmem:[#allocation8 + $0x14] sm:$0xf]
    %v289 = vld [vmem:[#allocation8 + $0x18] sm:$0xf]
    %v290 = vld [vmem:[#allocation8 + $0x1c] sm:$0xf]
    %v291 = vld [vmem:[#allocation8 + $0x20] sm:$0xf]
    %v292 = vld [vmem:[#allocation8 + $0x24] sm:$0xf]
    %v293 = vld [vmem:[#allocation8 + $0x28] sm:$0xf]
    %v294 = vld [vmem:[#allocation8 + $0x2c] sm:$0xf]
    %v295 = vld [vmem:[#allocation8 + $0x30] sm:$0xf]
    %v296 = vld [vmem:[#allocation8 + $0x34] sm:$0xf]
    %v297 = vld [vmem:[#allocation8 + $0x38] sm:$0xf]
    %v298 = vld [vmem:[#allocation8 + $0x3c] sm:$0xf]
    %v299 = vld [vmem:[%s6] sm:$0x1]
    %v301 = vlaneseq
    %v302 = vshrl.u32 %v301, 7
    %v303 = vsub.s32 0, %v302
    %v304 = vrot.slane %v299, %v303
    %v322 = vunpack.c.l.b16 %v283
    %v323 = vunpack.c.l.b16 %v284
    %v324 = vunpack.c.l.b16 %v285
    %v325 = vunpack.c.l.b16 %v286
    %v326 = vunpack.c.l.b16 %v287
    %v327 = vunpack.c.l.b16 %v288
    %v328 = vunpack.c.l.b16 %v289
    %v329 = vunpack.c.l.b16 %v290
    %v330 = vunpack.c.l.b16 %v291
    %v331 = vunpack.c.l.b16 %v292
    %v332 = vunpack.c.l.b16 %v293
    %v333 = vunpack.c.l.b16 %v294
    %v334 = vunpack.c.l.b16 %v295
    %v335 = vunpack.c.l.b16 %v296
    %v336 = vunpack.c.l.b16 %v297
    %v337 = vunpack.c.l.b16 %v298
    %v338 = vpack.c.b16 %v323, %v322
    %v339 = vpack.c.b16 %v325, %v324
    %v340 = vpack.c.b16 %v327, %v326
    %v341 = vpack.c.b16 %v329, %v328
    %v342 = vpack.c.b16 %v331, %v330
    %v343 = vpack.c.b16 %v333, %v332
    %v344 = vpack.c.b16 %v335, %v334
    %v345 = vpack.c.b16 %v337, %v336
    %354 = vmatprep.subr.bf16.mxu0 0
    %355 = vmatpush1.bf16.msra.mxu0 %v338
    %356 = vmatprep.subr.bf16.mxu0 0
    %357 = vmatpush1.bf16.msra.mxu0 %v339
    %358 = vmatprep.subr.bf16.mxu0 0
    %359 = vmatpush1.bf16.msra.mxu0 %v340
    %360 = vmatprep.subr.bf16.mxu0 0
    %361 = vmatpush1.bf16.msra.mxu0 %v341
    %362 = vmatprep.subr.bf16.mxu0 0
    %363 = vmatpush1.bf16.msra.mxu0 %v342
    %364 = vmatprep.subr.bf16.mxu0 0
    %365 = vmatpush1.bf16.msra.mxu0 %v343
    %366 = vmatprep.subr.bf16.mxu0 0
    %367 = vmatpush1.bf16.msra.mxu0 %v344
    %368 = vmatprep.subr.bf16.mxu0 0
    %369 = vmatpush1.bf16.msra.mxu0 %v345
    %370 = vmatprep.subr.bf16.mxu0 0
    %371 = vmatpush1.bf16.msra.mxu0 0
    %372 = vmatprep.subr.bf16.mxu0 0
    %373 = vmatpush1.bf16.msra.mxu0 0
    %374 = vmatprep.subr.bf16.mxu0 0
    %375 = vmatpush1.bf16.msra.mxu0 0
    %376 = vmatprep.subr.bf16.mxu0 0
    %377 = vmatpush1.bf16.msra.mxu0 0
    %378 = vmatprep.subr.bf16.mxu0 0
    %379 = vmatpush1.bf16.msra.mxu0 0
    %380 = vmatprep.subr.bf16.mxu0 0
    %381 = vmatpush1.bf16.msra.mxu0 0
    %382 = vmatprep.subr.bf16.mxu0 0
    %383 = vmatpush1.bf16.msra.mxu0 0
    %384 = vmatprep.subr.bf16.mxu0 0
    %385 = vmatpush1.bf16.msra.mxu0 0
    %386 = vmatprep.mubr.bf16.mxu0 0
    %387 = vmatmul.mubr.bf16.gmra.mrb[0].mxu0 %v282
    %v388 = vpop.f32.mrb[0].mxu0
    %v389 = vadd.f32 %v304, %v388
    %v390 = vpop.f32.mrb[0].mxu0
    %v391 = vpop.f32.mrb[0].mxu0
    %v392 = vpop.f32.mrb[0].mxu0
    %393 = vdwg.mxu0
    %394 = vst [vmem:[#allocation10] sm:$0xff] %v389
    // Predicated region
    $region46: #{rnd_forward.1} parent=1 // pred_check
      _
    $region47: #{rnd_forward.1} parent=1 // pred_check_branch
      %396 = sbr.rel (0) target = $region49
    $region48: #{rnd_forward.1} parent=1 // pred_region
      %s398 = ssub.s32 128, 128
      %399 = vsyncadd [#allocation4], %s398
      %s401 = sshll.u32 [#allocation10], 4
      %s402 = int_to_ptr.vmem [resolvable:$true] %s401
      %404 = dma.vmem_to_hbm [thread:$0]  %s402, 128, %s7, [#allocation4]
    $region49: #{rnd_forward.1} parent=1 // pred_fallthru
      _
    // Predicated region
    $region50: #{rnd_forward.1} parent=1 // pred_check
      _
    $region51: #{rnd_forward.1} parent=1 // pred_check_branch
      %406 = sbr.rel (0) target = $region53
    $region52: #{rnd_forward.1} parent=1 // pred_region
      %s408 = ssub.s32 128, 128
      %409 = vsyncadd [#allocation12], %s408
      %s411 = sshll.u32 [#allocation11], 4
      %s412 = int_to_ptr.vmem [resolvable:$true] %s411
      %414 = dma.vmem_to_hbm [thread:$0]  %s412, 128, %s8, [#allocation12]
    $region53: #{rnd_forward.1} parent=1 // pred_fallthru
      _
    // Predicated region
    $region54: #{rnd_forward.1} parent=1 // pred_check
      _
    $region55: #{rnd_forward.1} parent=1 // pred_check_branch
      %416 = sbr.rel (0) target = $region57
    $region56: #{rnd_forward.1} parent=1 // pred_region
      %417 = dma.done [#allocation4], 128
    $region57: #{rnd_forward.1} parent=1 // pred_fallthru
      _
    // Predicated region
    $region58: #{rnd_forward.1} parent=1 // pred_check
      _
    $region59: #{rnd_forward.1} parent=1 // pred_check_branch
      %419 = sbr.rel (0) target = $region61
    $region60: #{rnd_forward.1} parent=1 // pred_region
      %420 = dma.done [#allocation12], 128
    $region61: #{rnd_forward.1} parent=1 // pred_fallthru
      _
    %421 = vsyncpa [#allocation3], 1
    %422 = vsyncpa [#allocation6], 1
    %423 = vsyncpa [#allocation9], 1
    %424 = vsyncpa [#allocation4], 1
    %425 = vsyncpa [#allocation12], 1

</llo_original>
